<compile_context>
chip_gen: v7x
topology: tpu7x:2x2x1
jax: 0.10.0
libtpu: 0.0.40
codegen_flags: <defaults>
</compile_context>

<pallas_src>
import jax
import jax.numpy as jnp
from jax.experimental import pallas as pl
from jax.experimental.pallas import tpu as pltpu


def _round_up(x, m):
    return ((x + m - 1) // m) * m


def _classifier_kernel(x_ref, w1_ref, b1_ref, w2_ref, b2t_ref, o_ref):
    # x arrives f32 from HBM; cast to bf16 on the VPU (free under mem-bound roofline).
    x_bf16 = x_ref[...].astype(jnp.bfloat16)                       # (tb, 256)

    # First linear on the MXU, f32 accumulation.
    h = jnp.dot(x_bf16, w1_ref[...],
                preferred_element_type=jnp.float32)                # (tb, 64)
    h = jax.nn.sigmoid(h + b1_ref[...])                            # f32 bias + EUP sigmoid

    # Second linear, computed transposed so the batch dim lands on lanes
    # (lane-dense output tile): out_t[c, b] = sum_k w2[k, c] * h[b, k].
    out_t = jax.lax.dot_general(
        w2_ref[...], h.astype(jnp.bfloat16),
        dimension_numbers=(((0,), (1,)), ((), ())),
        preferred_element_type=jnp.float32)                        # (C, tb)

    o_ref[...] = (out_t + b2t_ref[...]).astype(o_ref.dtype)        # b2t: (C, 1)


def target_classifier_forward(emb, w1, b1, w2, b2, *, block_b=4096):
    """emb: (B, conexoes, 128) or (B, conexoes*128). Returns (B, num_classes) f32."""
    B = emb.shape[0]
    x = emb.reshape(B, -1)            # flatten in plain JAX (view-like reshape); keep f32
    in_features = x.shape[1]
    hidden = w1.shape[1]
    num_classes = w2.shape[1]

    # Tiny one-off weight/bias casts (negligible HBM traffic); x is NOT cast here.
    w1 = w1.astype(jnp.bfloat16)
    w2 = w2.astype(jnp.bfloat16)
    b1 = b1.reshape(1, hidden).astype(jnp.float32)
    b2t = b2.reshape(num_classes, 1).astype(jnp.float32)

    # Batch tile: whole array in one step if it fits; otherwise a multiple of 128
    # so the transposed output tile is lane-dense and the x tile is sublane-aligned.
    # No padding of x: Pallas handles the partial tail block; rows are independent.
    if B <= block_b:
        tb = B
    else:
        tb = _round_up(block_b, 128)
        if tb >= B:
            tb = B
    grid = pl.cdiv(B, tb)

    out_t = pl.pallas_call(
        _classifier_kernel,
        out_shape=jax.ShapeDtypeStruct((num_classes, B), jnp.float32),
        grid_spec=pltpu.PrefetchScalarGridSpec(
            num_scalar_prefetch=0,
            grid=(grid,),
            in_specs=[
                pl.BlockSpec((tb, in_features), lambda i: (i, 0)),       # x tile (streamed)
                pl.BlockSpec((in_features, hidden), lambda i: (0, 0)),   # w1 resident
                pl.BlockSpec((1, hidden), lambda i: (0, 0)),             # b1 resident
                pl.BlockSpec((hidden, num_classes), lambda i: (0, 0)),   # w2 resident
                pl.BlockSpec((num_classes, 1), lambda i: (0, 0)),        # b2^T resident
            ],
            out_specs=pl.BlockSpec((num_classes, tb), lambda i: (0, i)),
        ),
        compiler_params=pltpu.CompilerParams(
            dimension_semantics=("parallel",),  # batch tiles independent -> megacore on v7x
        ),
    )(x, w1, b1, w2, b2t)

    # Tiny (C, B) -> (B, C) transpose in the wrapper (B*C*4 bytes vs. B*1024 B x-stream).
    return out_t.T


def init_params(key, in_features=256, hidden=64, num_classes=4):
    """Deterministic init mimicking torch.nn.Linear (uniform(-1/sqrt(fan_in), ...))."""
    k1, k2, k3, k4 = jax.random.split(key, 4)
    lim1 = 1.0 / jnp.sqrt(jnp.float32(in_features))
    lim2 = 1.0 / jnp.sqrt(jnp.float32(hidden))
    w1 = jax.random.uniform(k1, (in_features, hidden), jnp.float32, -lim1, lim1)
    b1 = jax.random.uniform(k2, (1, hidden), jnp.float32, -lim1, lim1)
    w2 = jax.random.uniform(k3, (hidden, num_classes), jnp.float32, -lim2, lim2)
    b2 = jax.random.uniform(k4, (1, num_classes), jnp.float32, -lim2, lim2)
    return w1, b1, w2, b2


def _reference(emb, w1, b1, w2, b2, *, match_bf16):
    B = emb.shape[0]
    x = emb.reshape(B, -1).astype(jnp.float32)
    if match_bf16:
        h = jax.nn.sigmoid(
            jnp.dot(x.astype(jnp.bfloat16), w1.astype(jnp.bfloat16),
                    preferred_element_type=jnp.float32) + b1)
        return jnp.dot(h.astype(jnp.bfloat16), w2.astype(jnp.bfloat16),
                       preferred_element_type=jnp.float32) + b2
    h = jax.nn.sigmoid(jnp.dot(x, w1) + b1)
    return jnp.dot(h, w2) + b2


if __name__ == "__main__":
    key = jax.random.PRNGKey(0)
    k_emb, k_params, k_emb2 = jax.random.split(key, 3)

    B, conexoes, feat, num_classes = 2, 2, 128, 4
    emb = jax.random.normal(k_emb, (B, conexoes, feat), jnp.float32)
    w1, b1, w2, b2 = init_params(k_params, in_features=conexoes * feat,
                                 hidden=64, num_classes=num_classes)

    # Small batch: single grid step, full-array (unaligned) blocks.
    pred = target_classifier_forward(emb, w1, b1, w2, b2)
    pred = jax.block_until_ready(pred)
    assert pred.shape == (B, num_classes)

    ref_bf = _reference(emb, w1, b1, w2, b2, match_bf16=True)
    ref_f32 = _reference(emb, w1, b1, w2, b2, match_bf16=False)
    assert jnp.allclose(pred, ref_bf, atol=1e-3, rtol=1e-3)
    assert jnp.allclose(pred, ref_f32, atol=5e-2, rtol=5e-2)

    # Larger batch: grid > 1, lane-dense 128-wide output tiles, partial tail block.
    B2 = 200
    emb2 = jax.random.normal(k_emb2, (B2, conexoes, feat), jnp.float32)
    pred2 = target_classifier_forward(emb2, w1, b1, w2, b2, block_b=64)
    pred2 = jax.block_until_ready(pred2)
    assert pred2.shape == (B2, num_classes)
    ref2 = _reference(emb2, w1, b1, w2, b2, match_bf16=True)
    assert jnp.allclose(pred2, ref2, atol=1e-3, rtol=1e-3)

    print("KERNEL_OK")
</pallas_src>

<mosaic_0001>
module attributes {stable_mosaic.version = 11 : i64} {
  func.func @_classifier_kernel(%arg0: i32, %arg1: memref<2x256xf32, #tpu.memory_space<vmem>>, %arg2: memref<256x64xbf16, #tpu.memory_space<vmem>>, %arg3: memref<1x64xf32, #tpu.memory_space<vmem>>, %arg4: memref<64x4xbf16, #tpu.memory_space<vmem>>, %arg5: memref<4x1xf32, #tpu.memory_space<vmem>>, %arg6: memref<4x2xf32, #tpu.memory_space<vmem>>) attributes {dimension_semantics = [#tpu.dimension_semantics<parallel>], iteration_bounds = array<i64: 1>, scalar_prefetch = 0 : i64, scratch_operands = 0 : i64, tpu.core_type = #tpu.core_type<tc>, window_params = [{transform_indices = @transform_0, window_bounds = array<i64: 2, 256>}, {pipeline_mode = #tpu.pipeline_mode<synchronous>, transform_indices = @transform_1, window_bounds = array<i64: 256, 64>}, {pipeline_mode = #tpu.pipeline_mode<synchronous>, transform_indices = @transform_2, window_bounds = array<i64: 1, 64>}, {pipeline_mode = #tpu.pipeline_mode<synchronous>, transform_indices = @transform_3, window_bounds = array<i64: 64, 4>}, {pipeline_mode = #tpu.pipeline_mode<synchronous>, transform_indices = @transform_4, window_bounds = array<i64: 4, 1>}, {transform_indices = @transform_5, window_bounds = array<i64: 4, 2>}]} {
    %c0 = arith.constant 0 : index
    %c0_0 = arith.constant 0 : index
    %0 = vector.load %arg1[%c0, %c0_0] : memref<2x256xf32, #tpu.memory_space<vmem>>, vector<2x256xf32>
    %1 = arith.truncf %0 : vector<2x256xf32> to vector<2x256xbf16>
    %c0_1 = arith.constant 0 : index
    %c0_2 = arith.constant 0 : index
    %2 = vector.load %arg2[%c0_1, %c0_2] : memref<256x64xbf16, #tpu.memory_space<vmem>>, vector<256x64xbf16>
    %cst = arith.constant dense<0.000000e+00> : vector<2x64xf32>
    %3 = tpu.matmul %1, %2, %cst {dimension_numbers = #tpu.dot_dimension_numbers<[1], [0], [0], [1], [0, 0, 1, 1], [], []>} : vector<2x256xbf16>, vector<256x64xbf16>, vector<2x64xf32> -> vector<2x64xf32>
    %c0_3 = arith.constant 0 : index
    %c0_4 = arith.constant 0 : index
    %4 = vector.load %arg3[%c0_3, %c0_4] : memref<1x64xf32, #tpu.memory_space<vmem>>, vector<1x64xf32>
    %5 = vector.broadcast %4 : vector<1x64xf32> to vector<2x64xf32>
    %6 = arith.addf %3, %5 : vector<2x64xf32>
    %7 = arith.negf %6 : vector<2x64xf32>
    %8 = math.exp %7 : vector<2x64xf32>
    %cst_5 = arith.constant 1.000000e+00 : f32
    %9 = vector.broadcast %cst_5 : f32 to vector<2x64xf32>
    %10 = arith.addf %9, %8 : vector<2x64xf32>
    %11 = arith.divf %9, %10 : vector<2x64xf32>
    %c0_6 = arith.constant 0 : index
    %c0_7 = arith.constant 0 : index
    %12 = vector.load %arg4[%c0_6, %c0_7] : memref<64x4xbf16, #tpu.memory_space<vmem>>, vector<64x4xbf16>
    %13 = arith.truncf %11 : vector<2x64xf32> to vector<2x64xbf16>
    %cst_8 = arith.constant dense<0.000000e+00> : vector<4x2xf32>
    %14 = tpu.matmul %12, %13, %cst_8 {dimension_numbers = #tpu.dot_dimension_numbers<[0], [1], [1], [0], [0, 1, 1, 0], [], []>} : vector<64x4xbf16>, vector<2x64xbf16>, vector<4x2xf32> -> vector<4x2xf32>
    %c0_9 = arith.constant 0 : index
    %c0_10 = arith.constant 0 : index
    %15 = vector.load %arg5[%c0_9, %c0_10] : memref<4x1xf32, #tpu.memory_space<vmem>>, vector<4x1xf32>
    %16 = vector.broadcast %15 : vector<4x1xf32> to vector<4x2xf32>
    %17 = arith.addf %14, %16 : vector<4x2xf32>
    %c0_11 = arith.constant 0 : index
    %c0_12 = arith.constant 0 : index
    %18 = vector.load %arg6[%c0_11, %c0_12] : memref<4x2xf32, #tpu.memory_space<vmem>>, vector<4x2xf32>
    tpu.vector_store %arg6[%c0_11, %c0_12], %17 {strides = array<i32>} : memref<4x2xf32, #tpu.memory_space<vmem>>, vector<4x2xf32>,
    return
  }
  func.func @transform_0(%arg0: i32) -> (i32, i32) {
    %c0_i32 = arith.constant 0 : i32
    %c0_i32_0 = arith.constant 0 : i32
    return %arg0, %c0_i32 : i32, i32
  }
  func.func @transform_1(%arg0: i32) -> (i32, i32) {
    %c0_i32 = arith.constant 0 : i32
    %c0_i32_0 = arith.constant 0 : i32
    %c0_i32_1 = arith.constant 0 : i32
    return %c0_i32, %c0_i32_0 : i32, i32
  }
  func.func @transform_2(%arg0: i32) -> (i32, i32) {
    %c0_i32 = arith.constant 0 : i32
    %c0_i32_0 = arith.constant 0 : i32
    %c0_i32_1 = arith.constant 0 : i32
    return %c0_i32, %c0_i32_0 : i32, i32
  }
  func.func @transform_3(%arg0: i32) -> (i32, i32) {
    %c0_i32 = arith.constant 0 : i32
    %c0_i32_0 = arith.constant 0 : i32
    %c0_i32_1 = arith.constant 0 : i32
    return %c0_i32, %c0_i32_0 : i32, i32
  }
  func.func @transform_4(%arg0: i32) -> (i32, i32) {
    %c0_i32 = arith.constant 0 : i32
    %c0_i32_0 = arith.constant 0 : i32
    %c0_i32_1 = arith.constant 0 : i32
    return %c0_i32, %c0_i32_0 : i32, i32
  }
  func.func @transform_5(%arg0: i32) -> (i32, i32) {
    %c0_i32 = arith.constant 0 : i32
    %c0_i32_0 = arith.constant 0 : i32
    return %c0_i32, %arg0 : i32, i32
  }
}

</mosaic_0001>

<llo_original>
// kernel: tpu_custom_call.1
$region0: #{tpu_custom_call.1}
  #allocation0 [shape = 'u32[]', space=smem, size = 0x4, offset = 0x4, fixed_abs, tag = 'smem constant byte address 0x4 - core index']
  #allocation1 [shape = 'u32[144,128]{1,0:T(1,128)}', space=vmem, size = 0x12000, scoped, tag = 'internal scratch']
  %s0 = inlined_call_operand.vmem [shape: f32[2,256], index: 0, kind: input, shape index: {}]
  %s1 = inlined_call_operand.vmem [shape: bf16[256,64], index: 1, kind: input, shape index: {}]
  %s2 = inlined_call_operand.vmem [shape: f32[1,64], index: 2, kind: input, shape index: {}]
  %s3 = inlined_call_operand.vmem [shape: bf16[64,4], index: 3, kind: input, shape index: {}]
  %s4 = inlined_call_operand.vmem [shape: f32[4,1], index: 4, kind: input, shape index: {}]
  %s5 = inlined_call_operand.vmem [shape: f32[4,2], index: 5, kind: output, shape index: {}]
  %s6 = sld [smem:[#allocation0]]
  $region30: #{tpu_custom_call.1} parent=0
    _
  %s8 = ssub.s32 1, %s6
  %s9 = scalar_select 0, %s8, %s6
  // Predicated region
  $region2: #{tpu_custom_call.1} parent=0 // pred_check
    _
  $region3: #{tpu_custom_call.1} parent=0 // pred_check_branch
    %11 = sbr.rel (0) target = $region5
  $region4: #{tpu_custom_call.1} parent=0 // pred_region
    _
  $region5: #{tpu_custom_call.1} parent=0 // pred_fallthru
    _
  // Predicated region
  $region6: #{tpu_custom_call.1} parent=0 // pred_check
    _
  $region7: #{tpu_custom_call.1} parent=0 // pred_check_branch
    %13 = sbr.rel (0) target = $region9
  $region8: #{tpu_custom_call.1} parent=0 // pred_region
    _
  $region9: #{tpu_custom_call.1} parent=0 // pred_fallthru
    _
  // Predicated region
  $region10: #{tpu_custom_call.1} parent=0 // pred_check
    _
  $region11: #{tpu_custom_call.1} parent=0 // pred_check_branch
    %15 = sbr.rel (0) target = $region13
  $region12: #{tpu_custom_call.1} parent=0 // pred_region
    _
  $region13: #{tpu_custom_call.1} parent=0 // pred_fallthru
    _
  // Predicated region
  $region14: #{tpu_custom_call.1} parent=0 // pred_check
    _
  $region15: #{tpu_custom_call.1} parent=0 // pred_check_branch
    %17 = sbr.rel (0) target = $region17
  $region16: #{tpu_custom_call.1} parent=0 // pred_region
    _
  $region17: #{tpu_custom_call.1} parent=0 // pred_fallthru
    _
  // Predicated region
  $region18: #{tpu_custom_call.1} parent=0 // pred_check
    _
  $region19: #{tpu_custom_call.1} parent=0 // pred_check_branch
    %19 = sbr.rel (0) target = $region21
  $region20: #{tpu_custom_call.1} parent=0 // pred_region
    _
  $region21: #{tpu_custom_call.1} parent=0 // pred_fallthru
    _
  %v21 = vld [vmem:[%s0] sm:$0xf]
  %v24 = vunpack.c.l.s4 1983009808
  %v25 = vunpack.c.0.s8 %v24
  %v26 = vlaneseq
  %v27 = vshrl.u32 %v26, 7
  %v28 = vsub.s32 %v25, %v27
  %v29 = vrot.slane %v21, %v28
  %v30 = vcombine.high %v29, %v29
  %v33 = vpack.c.bf16 %v29, %v29
  %v34 = vpack.c.bf16 %v30, %v30
  %v35 = vld [vmem:[%s1] sm:$0xf]
  %v36 = vld [vmem:[%s1 + $0x4] sm:$0xf]
  %v37 = vld [vmem:[%s1 + $0x8] sm:$0xf]
  %v38 = vld [vmem:[%s1 + $0xc] sm:$0xf]
  %v39 = vld [vmem:[%s1 + $0x10] sm:$0xf]
  %v40 = vld [vmem:[%s1 + $0x14] sm:$0xf]
  %v41 = vld [vmem:[%s1 + $0x18] sm:$0xf]
  %v42 = vld [vmem:[%s1 + $0x1c] sm:$0xf]
  %v43 = vld [vmem:[%s1 + $0x20] sm:$0xf]
  %v44 = vld [vmem:[%s1 + $0x24] sm:$0xf]
  %v45 = vld [vmem:[%s1 + $0x28] sm:$0xf]
  %v46 = vld [vmem:[%s1 + $0x2c] sm:$0xf]
  %v47 = vld [vmem:[%s1 + $0x30] sm:$0xf]
  %v48 = vld [vmem:[%s1 + $0x34] sm:$0xf]
  %v49 = vld [vmem:[%s1 + $0x38] sm:$0xf]
  %v50 = vld [vmem:[%s1 + $0x3c] sm:$0xf]
  %v51 = vld [vmem:[%s1 + $0x40] sm:$0xf]
  %v52 = vld [vmem:[%s1 + $0x44] sm:$0xf]
  %v53 = vld [vmem:[%s1 + $0x48] sm:$0xf]
  %v54 = vld [vmem:[%s1 + $0x4c] sm:$0xf]
  %v55 = vld [vmem:[%s1 + $0x50] sm:$0xf]
  %v56 = vld [vmem:[%s1 + $0x54] sm:$0xf]
  %v57 = vld [vmem:[%s1 + $0x58] sm:$0xf]
  %v58 = vld [vmem:[%s1 + $0x5c] sm:$0xf]
  %v59 = vld [vmem:[%s1 + $0x60] sm:$0xf]
  %v60 = vld [vmem:[%s1 + $0x64] sm:$0xf]
  %v61 = vld [vmem:[%s1 + $0x68] sm:$0xf]
  %v62 = vld [vmem:[%s1 + $0x6c] sm:$0xf]
  %v63 = vld [vmem:[%s1 + $0x70] sm:$0xf]
  %v64 = vld [vmem:[%s1 + $0x74] sm:$0xf]
  %v65 = vld [vmem:[%s1 + $0x78] sm:$0xf]
  %v66 = vld [vmem:[%s1 + $0x7c] sm:$0xf]
  %v67 = vld [vmem:[%s2] sm:$0x1]
  %v69 = vlaneseq
  %v70 = vshrl.u32 %v69, 7
  %v71 = vsub.s32 0, %v70
  %v72 = vrot.slane %v67, %v71
  %v106 = vunpack.c.l.b16 %v35
  %v107 = vunpack.c.l.b16 %v36
  %v108 = vunpack.c.l.b16 %v37
  %v109 = vunpack.c.l.b16 %v38
  %v110 = vunpack.c.l.b16 %v39
  %v111 = vunpack.c.l.b16 %v40
  %v112 = vunpack.c.l.b16 %v41
  %v113 = vunpack.c.l.b16 %v42
  %v114 = vunpack.c.l.b16 %v43
  %v115 = vunpack.c.l.b16 %v44
  %v116 = vunpack.c.l.b16 %v45
  %v117 = vunpack.c.l.b16 %v46
  %v118 = vunpack.c.l.b16 %v47
  %v119 = vunpack.c.l.b16 %v48
  %v120 = vunpack.c.l.b16 %v49
  %v121 = vunpack.c.l.b16 %v50
  %v122 = vunpack.c.l.b16 %v51
  %v123 = vunpack.c.l.b16 %v52
  %v124 = vunpack.c.l.b16 %v53
  %v125 = vunpack.c.l.b16 %v54
  %v126 = vunpack.c.l.b16 %v55
  %v127 = vunpack.c.l.b16 %v56
  %v128 = vunpack.c.l.b16 %v57
  %v129 = vunpack.c.l.b16 %v58
  %v130 = vunpack.c.l.b16 %v59
  %v131 = vunpack.c.l.b16 %v60
  %v132 = vunpack.c.l.b16 %v61
  %v133 = vunpack.c.l.b16 %v62
  %v134 = vunpack.c.l.b16 %v63
  %v135 = vunpack.c.l.b16 %v64
  %v136 = vunpack.c.l.b16 %v65
  %v137 = vunpack.c.l.b16 %v66
  %v138 = vpack.c.b16 %v107, %v106
  %v139 = vpack.c.b16 %v109, %v108
  %v140 = vpack.c.b16 %v111, %v110
  %v141 = vpack.c.b16 %v113, %v112
  %v142 = vpack.c.b16 %v115, %v114
  %v143 = vpack.c.b16 %v117, %v116
  %v144 = vpack.c.b16 %v119, %v118
  %v145 = vpack.c.b16 %v121, %v120
  %v146 = vpack.c.b16 %v123, %v122
  %v147 = vpack.c.b16 %v125, %v124
  %v148 = vpack.c.b16 %v127, %v126
  %v149 = vpack.c.b16 %v129, %v128
  %v150 = vpack.c.b16 %v131, %v130
  %v151 = vpack.c.b16 %v133, %v132
  %v152 = vpack.c.b16 %v135, %v134
  %v153 = vpack.c.b16 %v137, %v136
  %170 = vmatprep.subr.bf16.mxu0 0
  %171 = vmatpush1.bf16.msra.mxu0 %v138
  %172 = vmatprep.subr.bf16.mxu0 0
  %173 = vmatpush1.bf16.msra.mxu0 %v139
  %174 = vmatprep.subr.bf16.mxu0 0
  %175 = vmatpush1.bf16.msra.mxu0 %v140
  %176 = vmatprep.subr.bf16.mxu0 0
  %177 = vmatpush1.bf16.msra.mxu0 %v141
  %178 = vmatprep.subr.bf16.mxu0 0
  %179 = vmatpush1.bf16.msra.mxu0 %v142
  %180 = vmatprep.subr.bf16.mxu0 0
  %181 = vmatpush1.bf16.msra.mxu0 %v143
  %182 = vmatprep.subr.bf16.mxu0 0
  %183 = vmatpush1.bf16.msra.mxu0 %v144
  %184 = vmatprep.subr.bf16.mxu0 0
  %185 = vmatpush1.bf16.msra.mxu0 %v145
  %186 = vmatprep.subr.bf16.mxu0 0
  %187 = vmatpush1.bf16.msra.mxu0 %v146
  %188 = vmatprep.subr.bf16.mxu0 0
  %189 = vmatpush1.bf16.msra.mxu0 %v147
  %190 = vmatprep.subr.bf16.mxu0 0
  %191 = vmatpush1.bf16.msra.mxu0 %v148
  %192 = vmatprep.subr.bf16.mxu0 0
  %193 = vmatpush1.bf16.msra.mxu0 %v149
  %194 = vmatprep.subr.bf16.mxu0 0
  %195 = vmatpush1.bf16.msra.mxu0 %v150
  %196 = vmatprep.subr.bf16.mxu0 0
  %197 = vmatpush1.bf16.msra.mxu0 %v151
  %198 = vmatprep.subr.bf16.mxu0 0
  %199 = vmatpush1.bf16.msra.mxu0 %v152
  %200 = vmatprep.subr.bf16.mxu0 0
  %201 = vmatpush1.bf16.msra.mxu0 %v153
  %202 = vmatprep.mubr.bf16.mxu0 %v34
  %203 = vmatmul.mubr.bf16.gmra.mrb[0].mxu0 %v33
  %v204 = vpop.f32.mrb[0].mxu0
  %v205 = vadd.f32 %v72, %v204
  %v206 = vpop.f32.mrb[0].mxu0
  %v207 = vpop.f32.mrb[0].mxu0
  %v208 = vpop.f32.mrb[0].mxu0
  %209 = vdwg.mxu0
  %v210 = vxor.u32 %v205, 2147483648
  %v211 = vmul.f32 %v210, 1.442695
  %v212 = vpow.pop %v211
  %v213 = vadd.f32 %v212, 1.0
  %v214 = vrcp.pop %v213
  %v215 = vmul.f32 1.0, %v214
  %v216 = vld [vmem:[%s3] sm:$0xf]
  %v217 = vld [vmem:[%s3 + $0x4] sm:$0xf]
  %v218 = vld [vmem:[%s3 + $0x8] sm:$0xf]
  %v219 = vld [vmem:[%s3 + $0xc] sm:$0xf]
  %v220 = vld [vmem:[%s3 + $0x10] sm:$0xf]
  %v221 = vld [vmem:[%s3 + $0x14] sm:$0xf]
  %v222 = vld [vmem:[%s3 + $0x18] sm:$0xf]
  %v223 = vld [vmem:[%s3 + $0x1c] sm:$0xf]
  %v224 = vpack.c.bf16 %v215, %v215
  %v225 = vld [vmem:[%s4] sm:$0xf]
  %227 = vset.pattern.permute.xlu0 0
  %228 = vperm.xlu0 %227, %v225
  %v229 = vpop.permute.xlu0 %228
  %v239 = vunpack.c.l.b16 %v216
  %v240 = vunpack.c.l.b16 %v217
  %v241 = vunpack.c.l.b16 %v218
  %v242 = vunpack.c.l.b16 %v219
  %v243 = vunpack.c.l.b16 %v220
  %v244 = vunpack.c.l.b16 %v221
  %v245 = vunpack.c.l.b16 %v222
  %v246 = vunpack.c.l.b16 %v223
  %v247 = vpack.c.b16 %v240, %v239
  %v248 = vpack.c.b16 %v242, %v241
  %v249 = vpack.c.b16 %v244, %v243
  %v250 = vpack.c.b16 %v246, %v245
  %255 = vxpose.xlu0.c.b16.start [1/8] %v247, 128
  %256 = vxpose.xlu0.c.b16.cont [2/8] %v248, 128
  %257 = vxpose.xlu0.c.b16.cont [3/8] %v249, 128
  %258 = vxpose.xlu0.c.b16.cont [4/8] %v250, 128
  %259 = vxpose.xlu0.c.b16.cont [5/8] 0, 128
  %260 = vxpose.xlu0.c.b16.cont [6/8] 0, 128
  %261 = vxpose.xlu0.c.b16.cont [7/8] 0, 128
  %262 = vxpose.xlu0.c.b16.end [8/8] 0, 128
  %v263 = vpop.trf.xlu0
  %v264 = vpop.trf.xlu0
  %v265 = vpop.trf.xlu0
  %v266 = vpop.trf.xlu0
  %v267 = vpop.trf.xlu0
  %v268 = vpop.trf.xlu0
  %v269 = vpop.trf.xlu0
  %v270 = vpop.trf.xlu0
  %vm271 = vcmask 523264
  %v273 = vsel %vm271, %v263, 0
  %v276 = vsel %vm271, %v224, 0
  %278 = vmatprep.subr.bf16.mxu0 0
  %279 = vmatpush1.bf16.xpose.msra.mxu0 %v276
  %280 = vmatprep.subr.bf16.mxu0 0
  %281 = vmatpush1.bf16.xpose.msra.mxu0 0
  %282 = vmatprep.subr.bf16.mxu0 0
  %283 = vmatpush1.bf16.xpose.msra.mxu0 0
  %284 = vmatprep.subr.bf16.mxu0 0
  %285 = vmatpush1.bf16.xpose.msra.mxu0 0
  %286 = vmatprep.subr.bf16.mxu0 0
  %287 = vmatpush1.bf16.xpose.msra.mxu0 0
  %288 = vmatprep.subr.bf16.mxu0 0
  %289 = vmatpush1.bf16.xpose.msra.mxu0 0
  %290 = vmatprep.subr.bf16.mxu0 0
  %291 = vmatpush1.bf16.xpose.msra.mxu0 0
  %292 = vmatprep.subr.bf16.mxu0 0
  %293 = vmatpush1.bf16.xpose.msra.mxu0 0
  %294 = vmatprep.subr.bf16.mxu0 0
  %295 = vmatpush1.bf16.xpose.msra.mxu0 0
  %296 = vmatprep.subr.bf16.mxu0 0
  %297 = vmatpush1.bf16.xpose.msra.mxu0 0
  %298 = vmatprep.subr.bf16.mxu0 0
  %299 = vmatpush1.bf16.xpose.msra.mxu0 0
  %300 = vmatprep.subr.bf16.mxu0 0
  %301 = vmatpush1.bf16.xpose.msra.mxu0 0
  %302 = vmatprep.subr.bf16.mxu0 0
  %303 = vmatpush1.bf16.xpose.msra.mxu0 0
  %304 = vmatprep.subr.bf16.mxu0 0
  %305 = vmatpush1.bf16.xpose.msra.mxu0 0
  %306 = vmatprep.subr.bf16.mxu0 0
  %307 = vmatpush1.bf16.xpose.msra.mxu0 0
  %308 = vmatprep.subr.bf16.mxu0 0
  %309 = vmatpush1.bf16.xpose.msra.mxu0 0
  %310 = vmatprep.mubr.bf16.mxu0 0
  %311 = vmatmul.mubr.bf16.gmra.mrb[0].mxu0 %v273
  %v312 = vpop.f32.mrb[0].mxu0
  %v313 = vadd.f32 %v229, %v312
  %v314 = vpop.f32.mrb[0].mxu0
  %v315 = vpop.f32.mrb[0].mxu0
  %v316 = vpop.f32.mrb[0].mxu0
  %317 = vdwg.mxu0
  %vm318 = vcmask 11264
  %319 = vst.msk [vmem:[%s5] sm:$0xf] %vm318, %v313
  // Predicated region
  $region22: #{tpu_custom_call.1} parent=0 // pred_check
    _
  $region23: #{tpu_custom_call.1} parent=0 // pred_check_branch
    %321 = sbr.rel (0) target = $region25
  $region24: #{tpu_custom_call.1} parent=0 // pred_region
    _
  $region25: #{tpu_custom_call.1} parent=0 // pred_fallthru
    _
  // Predicated region
  $region26: #{tpu_custom_call.1} parent=0 // pred_check
    _
  $region27: #{tpu_custom_call.1} parent=0 // pred_check_branch
    %323 = sbr.rel (0) target = $region29
  $region28: #{tpu_custom_call.1} parent=0 // pred_region
    _
  $region29: #{tpu_custom_call.1} parent=0 // pred_fallthru
    _

</llo_original>
